<compile_context>
chip_gen: v7x
topology: tpu7x:2x2x1
jax: 0.10.0
libtpu: 0.0.40
codegen_flags: <defaults>
</compile_context>

<pallas_src>
import jax
import jax.numpy as jnp
from jax.experimental import pallas as pl
from jax.experimental.pallas import tpu as pltpu


def _gelu_erf(v):
    # Exact-erf GELU: v * 0.5 * (1 + erf(v / sqrt(2))), erf via the
    # Abramowitz & Stegun 7.1.26 approximation (|err| < 1.5e-7, f32-accurate).
    # Fused form: Phi = where(u >= 0, 1 - 0.5*q, 0.5*q) with q = poly*exp(-z^2),
    # which avoids the sign/abs/extra-mul sequence of a generic erf.
    a1, a2, a3, a4, a5 = (0.254829592, -0.284496736, 1.421413741,
                          -1.453152027, 1.061405429)
    p = 0.3275911
    u = v * 0.7071067811865476
    z = jnp.abs(u)
    t = 1.0 / (1.0 + p * z)                               # EUP reciprocal
    poly = ((((a5 * t + a4) * t + a3) * t + a2) * t + a1) * t
    half_q = 0.5 * (poly * jnp.exp(-z * z))               # 0.5*(1 - erf(z)), z>=0
    phi = jnp.where(u >= 0.0, 1.0 - half_q, half_q)       # 0.5*(1 + erf(u))
    return v * phi


def conv1x1_gelu_kernel(x_ref, w_ref, b_ref, o_ref):
    # x_ref: (Cin, TM)   w_ref: (Cout, Cin)   b_ref: (Cout, 1)   o_ref: (Cout, TM)
    x = x_ref[...]
    w = w_ref[...]
    cin = x.shape[0]

    # 1x1 conv = K=Cin channel contraction.  Done on the VPU as column-broadcast
    # mul-adds over lane-dense (Cout, TM) vregs; the MXU is skipped on purpose
    # (a 3-deep contraction would leave it ~98% idle and just add push/drain
    # latency on every generation).
    acc = w[:, 0:1] * x[0:1, :] + b_ref[...]              # (Cout,1)*(1,TM)+(Cout,1)
    for ci in range(1, cin):                              # static unroll (Cin=3)
        acc = acc + w[:, ci:ci + 1] * x[ci:ci + 1, :]

    o_ref[...] = _gelu_erf(acc).astype(o_ref.dtype)


@jax.jit
def conv1x1_pad1_gelu(x_nchw, w_oihw, bias):
    N, Cin, H, W = x_nchw.shape
    Cout = w_oihw.shape[0]

    # Conv2d(kernel=1, stride=1, padding=1): spatial zero-pad -> (Hp, Wp).
    # (Padded border pixels correctly evaluate to gelu(bias[c]).)
    xp = jnp.pad(x_nchw, ((0, 0), (0, 0), (1, 1), (1, 1)))
    Hp, Wp = H + 2, W + 2
    M = N * Hp * Wp

    # Channel-major, spatial-minor: (Cin, M) so the big axis is the lane dim.
    xm = jnp.transpose(xp, (1, 0, 2, 3)).reshape(Cin, M)

    LANE = 128
    if M <= 32768:
        # Whole problem fits VMEM with huge margin on v5e/v6e/v7x -> one grid
        # step, no pipelining / per-step overhead.
        TM = pl.cdiv(M, LANE) * LANE
    else:
        TM = 2048
    Mpad = pl.cdiv(M, TM) * TM
    xm = jnp.pad(xm, ((0, 0), (0, Mpad - M)))

    wk = w_oihw.reshape(Cout, Cin)                        # (Cout, Cin)
    bk = bias.reshape(Cout, 1)                            # (Cout, 1)

    out = pl.pallas_call(
        conv1x1_gelu_kernel,
        out_shape=jax.ShapeDtypeStruct((Cout, Mpad), x_nchw.dtype),
        grid=(Mpad // TM,),
        in_specs=[
            pl.BlockSpec((Cin, TM), lambda i: (0, i)),
            pl.BlockSpec((Cout, Cin), lambda i: (0, 0)),
            pl.BlockSpec((Cout, 1), lambda i: (0, 0)),
        ],
        out_specs=pl.BlockSpec((Cout, TM), lambda i: (0, i)),
        compiler_params=pltpu.CompilerParams(
            dimension_semantics=("arbitrary",)),
    )(xm, wk, bk)

    # (Cout, M) -> (Cout, N, Hp, Wp) -> NCHW.  Fused with the rest under jit.
    out = out[:, :M].reshape(Cout, N, Hp, Wp).transpose(1, 0, 2, 3)
    return out


if __name__ == "__main__":
    key = jax.random.PRNGKey(0)
    kx, kw, kb = jax.random.split(key, 3)

    # Small shapes consistent with the module: Conv2d(3 -> 8, kernel 1, pad 1)
    N, Cin, H, W, Cout = 2, 3, 16, 16, 8
    x = jax.random.normal(kx, (N, Cin, H, W), dtype=jnp.float32)

    # Deterministic synthetic parameters (Conv2d weight shape (Cout, Cin, 1, 1))
    fan_in = Cin * 1 * 1
    bound = 1.0 / (fan_in ** 0.5)
    w = jax.random.uniform(kw, (Cout, Cin, 1, 1), jnp.float32, -bound, bound)
    b = jax.random.uniform(kb, (Cout,), jnp.float32, -bound, bound)

    out = conv1x1_pad1_gelu(x, w, b)
    jax.block_until_ready(out)
    assert out.shape == (N, Cout, H + 2, W + 2), out.shape

    # Pure-JAX reference (1x1 conv w/ zero pad + exact-erf GELU).
    xp = jnp.pad(x, ((0, 0), (0, 0), (1, 1), (1, 1)))
    v1 = jnp.einsum('nchw,oc->nohw', xp, w.reshape(Cout, Cin)) + b.reshape(1, Cout, 1, 1)
    ref = v1 * 0.5 * (1.0 + jax.scipy.special.erf(v1 * 0.7071067811865476))
    max_err = float(jnp.max(jnp.abs(out - ref)))
    assert max_err < 1e-5, max_err

    print("KERNEL_OK")
</pallas_src>

<mosaic_0001>
module attributes {stable_mosaic.version = 11 : i64} {
  func.func @conv1x1_gelu_kernel(%arg0: i32, %arg1: memref<3x768xf32, #tpu.memory_space<vmem>>, %arg2: memref<8x3xf32, #tpu.memory_space<vmem>>, %arg3: memref<8x1xf32, #tpu.memory_space<vmem>>, %arg4: memref<8x768xf32, #tpu.memory_space<vmem>>) attributes {dimension_semantics = [#tpu.dimension_semantics<arbitrary>], iteration_bounds = array<i64: 1>, scalar_prefetch = 0 : i64, scratch_operands = 0 : i64, tpu.core_type = #tpu.core_type<tc>, window_params = [{transform_indices = @transform_0, window_bounds = array<i64: 3, 768>}, {pipeline_mode = #tpu.pipeline_mode<synchronous>, transform_indices = @transform_1, window_bounds = array<i64: 8, 3>}, {pipeline_mode = #tpu.pipeline_mode<synchronous>, transform_indices = @transform_2, window_bounds = array<i64: 8, 1>}, {transform_indices = @transform_3, window_bounds = array<i64: 8, 768>}]} {
    %c0 = arith.constant 0 : index
    %c0_0 = arith.constant 0 : index
    %0 = vector.load %arg1[%c0, %c0_0] : memref<3x768xf32, #tpu.memory_space<vmem>>, vector<3x768xf32>
    %c0_1 = arith.constant 0 : index
    %c0_2 = arith.constant 0 : index
    %1 = vector.load %arg2[%c0_1, %c0_2] : memref<8x3xf32, #tpu.memory_space<vmem>>, vector<8x3xf32>
    %2 = vector.extract_strided_slice %1 {offsets = [0, 0], sizes = [8, 1], strides = [1, 1]} : vector<8x3xf32> to vector<8x1xf32>
    %3 = vector.extract_strided_slice %0 {offsets = [0, 0], sizes = [1, 768], strides = [1, 1]} : vector<3x768xf32> to vector<1x768xf32>
    %4 = vector.broadcast %2 : vector<8x1xf32> to vector<8x768xf32>
    %5 = vector.broadcast %3 : vector<1x768xf32> to vector<8x768xf32>
    %6 = arith.mulf %4, %5 : vector<8x768xf32>
    %c0_3 = arith.constant 0 : index
    %c0_4 = arith.constant 0 : index
    %7 = vector.load %arg3[%c0_3, %c0_4] : memref<8x1xf32, #tpu.memory_space<vmem>>, vector<8x1xf32>
    %8 = vector.broadcast %7 : vector<8x1xf32> to vector<8x768xf32>
    %9 = arith.addf %6, %8 : vector<8x768xf32>
    %10 = vector.extract_strided_slice %1 {offsets = [0, 1], sizes = [8, 1], strides = [1, 1]} : vector<8x3xf32> to vector<8x1xf32>
    %11 = vector.extract_strided_slice %0 {offsets = [1, 0], sizes = [1, 768], strides = [1, 1]} : vector<3x768xf32> to vector<1x768xf32>
    %12 = vector.broadcast %10 : vector<8x1xf32> to vector<8x768xf32>
    %13 = vector.broadcast %11 : vector<1x768xf32> to vector<8x768xf32>
    %14 = arith.mulf %12, %13 : vector<8x768xf32>
    %15 = arith.addf %9, %14 : vector<8x768xf32>
    %16 = vector.extract_strided_slice %1 {offsets = [0, 2], sizes = [8, 1], strides = [1, 1]} : vector<8x3xf32> to vector<8x1xf32>
    %17 = vector.extract_strided_slice %0 {offsets = [2, 0], sizes = [1, 768], strides = [1, 1]} : vector<3x768xf32> to vector<1x768xf32>
    %18 = vector.broadcast %16 : vector<8x1xf32> to vector<8x768xf32>
    %19 = vector.broadcast %17 : vector<1x768xf32> to vector<8x768xf32>
    %20 = arith.mulf %18, %19 : vector<8x768xf32>
    %21 = arith.addf %15, %20 : vector<8x768xf32>
    %cst = arith.constant 0.707106769 : f32
    %22 = vector.broadcast %cst : f32 to vector<8x768xf32>
    %23 = arith.mulf %21, %22 : vector<8x768xf32>
    %24 = math.absf %23 : vector<8x768xf32>
    %cst_5 = arith.constant 0.327591091 : f32
    %25 = vector.broadcast %cst_5 : f32 to vector<8x768xf32>
    %26 = arith.mulf %25, %24 : vector<8x768xf32>
    %cst_6 = arith.constant 1.000000e+00 : f32
    %27 = vector.broadcast %cst_6 : f32 to vector<8x768xf32>
    %28 = arith.addf %27, %26 : vector<8x768xf32>
    %cst_7 = arith.constant 1.000000e+00 : f32
    %29 = vector.broadcast %cst_7 : f32 to vector<8x768xf32>
    %30 = arith.divf %29, %28 : vector<8x768xf32>
    %cst_8 = arith.constant 1.06140542 : f32
    %31 = vector.broadcast %cst_8 : f32 to vector<8x768xf32>
    %32 = arith.mulf %31, %30 : vector<8x768xf32>
    %cst_9 = arith.constant -1.45315206 : f32
    %33 = vector.broadcast %cst_9 : f32 to vector<8x768xf32>
    %34 = arith.addf %32, %33 : vector<8x768xf32>
    %35 = arith.mulf %34, %30 : vector<8x768xf32>
    %cst_10 = arith.constant 1.42141378 : f32
    %36 = vector.broadcast %cst_10 : f32 to vector<8x768xf32>
    %37 = arith.addf %35, %36 : vector<8x768xf32>
    %38 = arith.mulf %37, %30 : vector<8x768xf32>
    %cst_11 = arith.constant -0.284496725 : f32
    %39 = vector.broadcast %cst_11 : f32 to vector<8x768xf32>
    %40 = arith.addf %38, %39 : vector<8x768xf32>
    %41 = arith.mulf %40, %30 : vector<8x768xf32>
    %cst_12 = arith.constant 0.254829586 : f32
    %42 = vector.broadcast %cst_12 : f32 to vector<8x768xf32>
    %43 = arith.addf %41, %42 : vector<8x768xf32>
    %44 = arith.mulf %43, %30 : vector<8x768xf32>
    %cst_13 = arith.constant 0.000000e+00 : f32
    %45 = vector.broadcast %cst_13 : f32 to vector<8x768xf32>
    %46 = arith.subf %45, %24 : vector<8x768xf32>
    %47 = arith.mulf %46, %24 : vector<8x768xf32>
    %48 = math.exp %47 : vector<8x768xf32>
    %49 = arith.mulf %44, %48 : vector<8x768xf32>
    %cst_14 = arith.constant 5.000000e-01 : f32
    %50 = vector.broadcast %cst_14 : f32 to vector<8x768xf32>
    %51 = arith.mulf %50, %49 : vector<8x768xf32>
    %cst_15 = arith.constant 0.000000e+00 : f32
    %52 = vector.broadcast %cst_15 : f32 to vector<8x768xf32>
    %53 = arith.cmpf oge, %23, %52 : vector<8x768xf32>
    %cst_16 = arith.constant 1.000000e+00 : f32
    %54 = vector.broadcast %cst_16 : f32 to vector<8x768xf32>
    %55 = arith.subf %54, %51 : vector<8x768xf32>
    %56 = arith.select %53, %55, %51 : vector<8x768xi1>, vector<8x768xf32>
    %57 = arith.mulf %21, %56 : vector<8x768xf32>
    %c0_17 = arith.constant 0 : index
    %c0_18 = arith.constant 0 : index
    %58 = vector.load %arg4[%c0_17, %c0_18] : memref<8x768xf32, #tpu.memory_space<vmem>>, vector<8x768xf32>
    tpu.vector_store %arg4[%c0_17, %c0_18], %57 {strides = array<i32>} : memref<8x768xf32, #tpu.memory_space<vmem>>, vector<8x768xf32>,
    return
  }
  func.func @transform_0(%arg0: i32) -> (i32, i32) {
    %c0_i32 = arith.constant 0 : i32
    %c0_i32_0 = arith.constant 0 : i32
    return %c0_i32, %arg0 : i32, i32
  }
  func.func @transform_1(%arg0: i32) -> (i32, i32) {
    %c0_i32 = arith.constant 0 : i32
    %c0_i32_0 = arith.constant 0 : i32
    %c0_i32_1 = arith.constant 0 : i32
    return %c0_i32, %c0_i32_0 : i32, i32
  }
  func.func @transform_2(%arg0: i32) -> (i32, i32) {
    %c0_i32 = arith.constant 0 : i32
    %c0_i32_0 = arith.constant 0 : i32
    %c0_i32_1 = arith.constant 0 : i32
    return %c0_i32, %c0_i32_0 : i32, i32
  }
  func.func @transform_3(%arg0: i32) -> (i32, i32) {
    %c0_i32 = arith.constant 0 : i32
    %c0_i32_0 = arith.constant 0 : i32
    return %c0_i32, %arg0 : i32, i32
  }
}

</mosaic_0001>

<llo_original>
// kernel: conv1x1_pad1_gelu.1
$region0: #{conv1x1_pad1_gelu.1}
  #allocation0 [shape = 'u32[]', space=smem, size = 0x4, offset = 0x4, fixed_abs, tag = 'smem constant byte address 0x4 - core index']
  #allocation1 [shape = 'u32[144,128]{1,0:T(1,128)}', space=vmem, size = 0x12000, scoped, tag = 'internal scratch']
  %s0 = inlined_call_operand.vmem [shape: f32[3,768], index: 0, kind: input, shape index: {}]
  %s1 = inlined_call_operand.vmem [shape: f32[8,3], index: 1, kind: input, shape index: {}]
  %s2 = inlined_call_operand.vmem [shape: f32[8,1], index: 2, kind: input, shape index: {}]
  %s3 = inlined_call_operand.vmem [shape: f32[8,768], index: 3, kind: output, shape index: {}]
  %s4 = sld [smem:[#allocation0]]
  $region22: #{conv1x1_pad1_gelu.1} parent=0
    _
  %s6 = ssub.s32 1, %s4
  %s7 = scalar_select 0, %s6, %s4
  // Predicated region
  $region2: #{conv1x1_pad1_gelu.1} parent=0 // pred_check
    _
  $region3: #{conv1x1_pad1_gelu.1} parent=0 // pred_check_branch
    %9 = sbr.rel (0) target = $region5
  $region4: #{conv1x1_pad1_gelu.1} parent=0 // pred_region
    _
  $region5: #{conv1x1_pad1_gelu.1} parent=0 // pred_fallthru
    _
  // Predicated region
  $region6: #{conv1x1_pad1_gelu.1} parent=0 // pred_check
    _
  $region7: #{conv1x1_pad1_gelu.1} parent=0 // pred_check_branch
    %11 = sbr.rel (0) target = $region9
  $region8: #{conv1x1_pad1_gelu.1} parent=0 // pred_region
    _
  $region9: #{conv1x1_pad1_gelu.1} parent=0 // pred_fallthru
    _
  // Predicated region
  $region10: #{conv1x1_pad1_gelu.1} parent=0 // pred_check
    _
  $region11: #{conv1x1_pad1_gelu.1} parent=0 // pred_check_branch
    %13 = sbr.rel (0) target = $region13
  $region12: #{conv1x1_pad1_gelu.1} parent=0 // pred_region
    _
  $region13: #{conv1x1_pad1_gelu.1} parent=0 // pred_fallthru
    _
  %v14 = vld [vmem:[%s0] sm:$0x77]
  %v15 = vld [vmem:[%s0 + $0x8] sm:$0x77]
  %v16 = vld [vmem:[%s0 + $0x10] sm:$0x77]
  %v17 = vld [vmem:[%s1] sm:$0xff]
  %19 = vset.pattern.permute.xlu0 0
  %20 = vperm.xlu0 %19, %v17
  %v21 = vpop.permute.xlu0 %20
  %v26 = vlaneseq
  %v27 = vshrl.u32 %v26, 7
  %v28 = vsub.s32 0, %v27
  %v29 = vrot.slane %v14, %v28
  %v30 = vlaneseq
  %v31 = vshrl.u32 %v30, 7
  %v32 = vsub.s32 4, %v31
  %v33 = vrot.slane %v14, %v32
  %v34 = vlaneseq
  %v35 = vshrl.u32 %v34, 7
  %v36 = vsub.s32 0, %v35
  %v37 = vrot.slane %v15, %v36
  %v38 = vlaneseq
  %v39 = vshrl.u32 %v38, 7
  %v40 = vsub.s32 4, %v39
  %v41 = vrot.slane %v15, %v40
  %v42 = vlaneseq
  %v43 = vshrl.u32 %v42, 7
  %v44 = vsub.s32 0, %v43
  %v45 = vrot.slane %v16, %v44
  %v46 = vlaneseq
  %v47 = vshrl.u32 %v46, 7
  %v48 = vsub.s32 4, %v47
  %v49 = vrot.slane %v16, %v48
  %v56 = vlaneseq
  %v57 = vshrl.u32 %v56, 7
  %v58 = vsub.s32 0, %v57
  %v59 = vrot.slane %v29, %v58
  %v60 = vlaneseq
  %v61 = vshrl.u32 %v60, 7
  %v62 = vsub.s32 0, %v61
  %v63 = vrot.slane %v33, %v62
  %v64 = vlaneseq
  %v65 = vshrl.u32 %v64, 7
  %v66 = vsub.s32 0, %v65
  %v67 = vrot.slane %v37, %v66
  %v68 = vlaneseq
  %v69 = vshrl.u32 %v68, 7
  %v70 = vsub.s32 0, %v69
  %v71 = vrot.slane %v41, %v70
  %v72 = vlaneseq
  %v73 = vshrl.u32 %v72, 7
  %v74 = vsub.s32 0, %v73
  %v75 = vrot.slane %v45, %v74
  %v76 = vlaneseq
  %v77 = vshrl.u32 %v76, 7
  %v78 = vsub.s32 0, %v77
  %v79 = vrot.slane %v49, %v78
  %v80 = vmul.f32 %v21, %v59
  %v81 = vmul.f32 %v21, %v63
  %v82 = vmul.f32 %v21, %v67
  %v83 = vmul.f32 %v21, %v71
  %v84 = vmul.f32 %v21, %v75
  %v85 = vmul.f32 %v21, %v79
  %v86 = vld [vmem:[%s2] sm:$0xff]
  %88 = vset.pattern.permute.xlu0 0
  %89 = vperm.xlu0 %88, %v86
  %v90 = vpop.permute.xlu0 %89
  %v92 = vadd.f32 %v80, %v90
  %v93 = vadd.f32 %v81, %v90
  %v94 = vadd.f32 %v82, %v90
  %v95 = vadd.f32 %v83, %v90
  %v96 = vadd.f32 %v84, %v90
  %v97 = vadd.f32 %v85, %v90
  %98 = vset.pattern.permute.xlu0 1
  %99 = vperm.xlu0 %98, %v17
  %v100 = vpop.permute.xlu0 %99
  %v102 = vlaneseq
  %v103 = vshrl.u32 %v102, 7
  %v104 = vsub.s32 1, %v103
  %v105 = vrot.slane %v14, %v104
  %v106 = vlaneseq
  %v107 = vshrl.u32 %v106, 7
  %v108 = vsub.s32 5, %v107
  %v109 = vrot.slane %v14, %v108
  %v110 = vlaneseq
  %v111 = vshrl.u32 %v110, 7
  %v112 = vsub.s32 1, %v111
  %v113 = vrot.slane %v15, %v112
  %v114 = vlaneseq
  %v115 = vshrl.u32 %v114, 7
  %v116 = vsub.s32 5, %v115
  %v117 = vrot.slane %v15, %v116
  %v118 = vlaneseq
  %v119 = vshrl.u32 %v118, 7
  %v120 = vsub.s32 1, %v119
  %v121 = vrot.slane %v16, %v120
  %v122 = vlaneseq
  %v123 = vshrl.u32 %v122, 7
  %v124 = vsub.s32 5, %v123
  %v125 = vrot.slane %v16, %v124
  %v132 = vlaneseq
  %v133 = vshrl.u32 %v132, 7
  %v134 = vsub.s32 1, %v133
  %v135 = vrot.slane %v105, %v134
  %v136 = vlaneseq
  %v137 = vshrl.u32 %v136, 7
  %v138 = vsub.s32 1, %v137
  %v139 = vrot.slane %v109, %v138
  %v140 = vlaneseq
  %v141 = vshrl.u32 %v140, 7
  %v142 = vsub.s32 1, %v141
  %v143 = vrot.slane %v113, %v142
  %v144 = vlaneseq
  %v145 = vshrl.u32 %v144, 7
  %v146 = vsub.s32 1, %v145
  %v147 = vrot.slane %v117, %v146
  %v148 = vlaneseq
  %v149 = vshrl.u32 %v148, 7
  %v150 = vsub.s32 1, %v149
  %v151 = vrot.slane %v121, %v150
  %v152 = vlaneseq
  %v153 = vshrl.u32 %v152, 7
  %v154 = vsub.s32 1, %v153
  %v155 = vrot.slane %v125, %v154
  %v156 = vmul.f32 %v100, %v135
  %v157 = vmul.f32 %v100, %v139
  %v158 = vmul.f32 %v100, %v143
  %v159 = vmul.f32 %v100, %v147
  %v160 = vmul.f32 %v100, %v151
  %v161 = vmul.f32 %v100, %v155
  %v162 = vadd.f32 %v92, %v156
  %v163 = vadd.f32 %v93, %v157
  %v164 = vadd.f32 %v94, %v158
  %v165 = vadd.f32 %v95, %v159
  %v166 = vadd.f32 %v96, %v160
  %v167 = vadd.f32 %v97, %v161
  %168 = vset.pattern.permute.xlu0 2
  %169 = vperm.xlu0 %168, %v17
  %v170 = vpop.permute.xlu0 %169
  %v172 = vlaneseq
  %v173 = vshrl.u32 %v172, 7
  %v174 = vsub.s32 2, %v173
  %v175 = vrot.slane %v14, %v174
  %v176 = vlaneseq
  %v177 = vshrl.u32 %v176, 7
  %v178 = vsub.s32 6, %v177
  %v179 = vrot.slane %v14, %v178
  %v180 = vlaneseq
  %v181 = vshrl.u32 %v180, 7
  %v182 = vsub.s32 2, %v181
  %v183 = vrot.slane %v15, %v182
  %v184 = vlaneseq
  %v185 = vshrl.u32 %v184, 7
  %v186 = vsub.s32 6, %v185
  %v187 = vrot.slane %v15, %v186
  %v188 = vlaneseq
  %v189 = vshrl.u32 %v188, 7
  %v190 = vsub.s32 2, %v189
  %v191 = vrot.slane %v16, %v190
  %v192 = vlaneseq
  %v193 = vshrl.u32 %v192, 7
  %v194 = vsub.s32 6, %v193
  %v195 = vrot.slane %v16, %v194
  %v202 = vlaneseq
  %v203 = vshrl.u32 %v202, 7
  %v204 = vsub.s32 2, %v203
  %v205 = vrot.slane %v175, %v204
  %v206 = vlaneseq
  %v207 = vshrl.u32 %v206, 7
  %v208 = vsub.s32 2, %v207
  %v209 = vrot.slane %v179, %v208
  %v210 = vlaneseq
  %v211 = vshrl.u32 %v210, 7
  %v212 = vsub.s32 2, %v211
  %v213 = vrot.slane %v183, %v212
  %v214 = vlaneseq
  %v215 = vshrl.u32 %v214, 7
  %v216 = vsub.s32 2, %v215
  %v217 = vrot.slane %v187, %v216
  %v218 = vlaneseq
  %v219 = vshrl.u32 %v218, 7
  %v220 = vsub.s32 2, %v219
  %v221 = vrot.slane %v191, %v220
  %v222 = vlaneseq
  %v223 = vshrl.u32 %v222, 7
  %v224 = vsub.s32 2, %v223
  %v225 = vrot.slane %v195, %v224
  %v226 = vmul.f32 %v170, %v205
  %v227 = vmul.f32 %v170, %v209
  %v228 = vmul.f32 %v170, %v213
  %v229 = vmul.f32 %v170, %v217
  %v230 = vmul.f32 %v170, %v221
  %v231 = vmul.f32 %v170, %v225
  %v232 = vadd.f32 %v162, %v226
  %v233 = vadd.f32 %v163, %v227
  %v234 = vadd.f32 %v164, %v228
  %v235 = vadd.f32 %v165, %v229
  %v236 = vadd.f32 %v166, %v230
  %v237 = vadd.f32 %v167, %v231
  %v238 = vmul.f32 %v232, 0.70710677
  %v239 = vmul.f32 %v233, 0.70710677
  %v240 = vmul.f32 %v234, 0.70710677
  %v241 = vmul.f32 %v235, 0.70710677
  %v242 = vmul.f32 %v236, 0.70710677
  %v243 = vmul.f32 %v237, 0.70710677
  %v244 = vand.u32 2147483647, %v238
  %v245 = vand.u32 2147483647, %v239
  %v246 = vand.u32 2147483647, %v240
  %v247 = vand.u32 2147483647, %v241
  %v248 = vand.u32 2147483647, %v242
  %v249 = vand.u32 2147483647, %v243
  %v250 = vmul.f32 %v244, 0.3275911
  %v251 = vmul.f32 %v245, 0.3275911
  %v252 = vmul.f32 %v246, 0.3275911
  %v253 = vmul.f32 %v247, 0.3275911
  %v254 = vmul.f32 %v248, 0.3275911
  %v255 = vmul.f32 %v249, 0.3275911
  %v256 = vadd.f32 %v250, 1.0
  %v257 = vadd.f32 %v251, 1.0
  %v258 = vadd.f32 %v252, 1.0
  %v259 = vadd.f32 %v253, 1.0
  %v260 = vadd.f32 %v254, 1.0
  %v261 = vadd.f32 %v255, 1.0
  %v262 = vrcp.pop %v256
  %v263 = vmul.f32 1.0, %v262
  %v264 = vrcp.pop %v257
  %v265 = vmul.f32 1.0, %v264
  %v266 = vrcp.pop %v258
  %v267 = vmul.f32 1.0, %v266
  %v268 = vrcp.pop %v259
  %v269 = vmul.f32 1.0, %v268
  %v270 = vrcp.pop %v260
  %v271 = vmul.f32 1.0, %v270
  %v272 = vrcp.pop %v261
  %v273 = vmul.f32 1.0, %v272
  %v274 = vmul.f32 %v263, 1.0614054
  %v275 = vmul.f32 %v265, 1.0614054
  %v276 = vmul.f32 %v267, 1.0614054
  %v277 = vmul.f32 %v269, 1.0614054
  %v278 = vmul.f32 %v271, 1.0614054
  %v279 = vmul.f32 %v273, 1.0614054
  %v280 = vadd.f32 %v274, -1.4531521
  %v281 = vadd.f32 %v275, -1.4531521
  %v282 = vadd.f32 %v276, -1.4531521
  %v283 = vadd.f32 %v277, -1.4531521
  %v284 = vadd.f32 %v278, -1.4531521
  %v285 = vadd.f32 %v279, -1.4531521
  %v286 = vmul.f32 %v280, %v263
  %v287 = vmul.f32 %v281, %v265
  %v288 = vmul.f32 %v282, %v267
  %v289 = vmul.f32 %v283, %v269
  %v290 = vmul.f32 %v284, %v271
  %v291 = vmul.f32 %v285, %v273
  %v292 = vadd.f32 %v286, 1.4214138
  %v293 = vadd.f32 %v287, 1.4214138
  %v294 = vadd.f32 %v288, 1.4214138
  %v295 = vadd.f32 %v289, 1.4214138
  %v296 = vadd.f32 %v290, 1.4214138
  %v297 = vadd.f32 %v291, 1.4214138
  %v298 = vmul.f32 %v292, %v263
  %v299 = vmul.f32 %v293, %v265
  %v300 = vmul.f32 %v294, %v267
  %v301 = vmul.f32 %v295, %v269
  %v302 = vmul.f32 %v296, %v271
  %v303 = vmul.f32 %v297, %v273
  %v304 = vadd.f32 %v298, -0.28449672
  %v305 = vadd.f32 %v299, -0.28449672
  %v306 = vadd.f32 %v300, -0.28449672
  %v307 = vadd.f32 %v301, -0.28449672
  %v308 = vadd.f32 %v302, -0.28449672
  %v309 = vadd.f32 %v303, -0.28449672
  %v310 = vmul.f32 %v304, %v263
  %v311 = vmul.f32 %v305, %v265
  %v312 = vmul.f32 %v306, %v267
  %v313 = vmul.f32 %v307, %v269
  %v314 = vmul.f32 %v308, %v271
  %v315 = vmul.f32 %v309, %v273
  %v316 = vadd.f32 %v310, 0.2548296
  %v317 = vadd.f32 %v311, 0.2548296
  %v318 = vadd.f32 %v312, 0.2548296
  %v319 = vadd.f32 %v313, 0.2548296
  %v320 = vadd.f32 %v314, 0.2548296
  %v321 = vadd.f32 %v315, 0.2548296
  %v322 = vmul.f32 %v316, %v263
  %v323 = vmul.f32 %v317, %v265
  %v324 = vmul.f32 %v318, %v267
  %v325 = vmul.f32 %v319, %v269
  %v326 = vmul.f32 %v320, %v271
  %v327 = vmul.f32 %v321, %v273
  %v328 = vsub.f32 0.0, %v244
  %v329 = vsub.f32 0.0, %v245
  %v330 = vsub.f32 0.0, %v246
  %v331 = vsub.f32 0.0, %v247
  %v332 = vsub.f32 0.0, %v248
  %v333 = vsub.f32 0.0, %v249
  %v334 = vmul.f32 %v328, %v244
  %v335 = vmul.f32 %v329, %v245
  %v336 = vmul.f32 %v330, %v246
  %v337 = vmul.f32 %v331, %v247
  %v338 = vmul.f32 %v332, %v248
  %v339 = vmul.f32 %v333, %v249
  %v340 = vmul.f32 %v334, 1.442695
  %v341 = vpow.pop %v340
  %v342 = vmul.f32 %v335, 1.442695
  %v343 = vpow.pop %v342
  %v344 = vmul.f32 %v336, 1.442695
  %v345 = vpow.pop %v344
  %v346 = vmul.f32 %v337, 1.442695
  %v347 = vpow.pop %v346
  %v348 = vmul.f32 %v338, 1.442695
  %v349 = vpow.pop %v348
  %v350 = vmul.f32 %v339, 1.442695
  %v351 = vpow.pop %v350
  %v352 = vmul.f32 %v322, %v341
  %v353 = vmul.f32 %v323, %v343
  %v354 = vmul.f32 %v324, %v345
  %v355 = vmul.f32 %v325, %v347
  %v356 = vmul.f32 %v326, %v349
  %v357 = vmul.f32 %v327, %v351
  %v358 = vmul.f32 %v352, 0.5
  %v359 = vmul.f32 %v353, 0.5
  %v360 = vmul.f32 %v354, 0.5
  %v361 = vmul.f32 %v355, 0.5
  %v362 = vmul.f32 %v356, 0.5
  %v363 = vmul.f32 %v357, 0.5
  %vm364 = vcmp.ge.f32.partialorder %v238, 0.0
  %vm365 = vcmp.ge.f32.partialorder %v239, 0.0
  %vm366 = vcmp.ge.f32.partialorder %v240, 0.0
  %vm367 = vcmp.ge.f32.partialorder %v241, 0.0
  %vm368 = vcmp.ge.f32.partialorder %v242, 0.0
  %vm369 = vcmp.ge.f32.partialorder %v243, 0.0
  %v370 = vsub.f32 1.0, %v358
  %v371 = vsub.f32 1.0, %v359
  %v372 = vsub.f32 1.0, %v360
  %v373 = vsub.f32 1.0, %v361
  %v374 = vsub.f32 1.0, %v362
  %v375 = vsub.f32 1.0, %v363
  %v376 = vsel %vm364, %v370, %v358
  %v377 = vsel %vm365, %v371, %v359
  %v378 = vsel %vm366, %v372, %v360
  %v379 = vsel %vm367, %v373, %v361
  %v380 = vsel %vm368, %v374, %v362
  %v381 = vsel %vm369, %v375, %v363
  %v382 = vmul.f32 %v232, %v376
  %v383 = vmul.f32 %v233, %v377
  %v384 = vmul.f32 %v234, %v378
  %v385 = vmul.f32 %v235, %v379
  %v386 = vmul.f32 %v236, %v380
  %v387 = vmul.f32 %v237, %v381
  %388 = vst [vmem:[%s3] sm:$0xff] %v382
  %389 = vst [vmem:[%s3 + $0x8] sm:$0xff] %v383
  %390 = vst [vmem:[%s3 + $0x10] sm:$0xff] %v384
  %391 = vst [vmem:[%s3 + $0x18] sm:$0xff] %v385
  %392 = vst [vmem:[%s3 + $0x20] sm:$0xff] %v386
  %393 = vst [vmem:[%s3 + $0x28] sm:$0xff] %v387
  // Predicated region
  $region14: #{conv1x1_pad1_gelu.1} parent=0 // pred_check
    _
  $region15: #{conv1x1_pad1_gelu.1} parent=0 // pred_check_branch
    %395 = sbr.rel (0) target = $region17
  $region16: #{conv1x1_pad1_gelu.1} parent=0 // pred_region
    _
  $region17: #{conv1x1_pad1_gelu.1} parent=0 // pred_fallthru
    _
  // Predicated region
  $region18: #{conv1x1_pad1_gelu.1} parent=0 // pred_check
    _
  $region19: #{conv1x1_pad1_gelu.1} parent=0 // pred_check_branch
    %397 = sbr.rel (0) target = $region21
  $region20: #{conv1x1_pad1_gelu.1} parent=0 // pred_region
    _
  $region21: #{conv1x1_pad1_gelu.1} parent=0 // pred_fallthru
    _

</llo_original>
